<compile_context>
chip_gen: v5e
topology: v5e:2x2
jax: 0.10.0
libtpu: 0.0.40
codegen_flags: <defaults>
</compile_context>

<pallas_src>
import functools

import jax
import jax.numpy as jnp
from jax.experimental import pallas as pl
from jax.experimental.pallas import tpu as pltpu


def _conv_model_kernel(lp_ref, w01_ref, b1_ref, w2_ref, b2_ref,
                       w3_ref, b3_ref, w4_ref, b4_ref, out_ref, *, bt, n):
    # One grid step == one tile of bt graphs, presented as a (bt*n, D) row slab.
    cdt = w2_ref.dtype                                         # matmul input dtype
    inv_n = jnp.float32(1.0 / n)

    # In-kernel cast of the streamed input (VPU work hidden under the MXU).
    lp = lp_ref[...].astype(cdt)                               # (bt*n, D)

    # Vertex MLP (filter projection pre-folded: W01 = wf @ W1).
    h1 = jnp.maximum(
        jnp.dot(lp, w01_ref[...], preferred_element_type=jnp.float32)
        + b1_ref[...], 0.0)                                    # (bt*n, Hp)  f32
    v = (jnp.dot(h1.astype(cdt), w2_ref[...],
                 preferred_element_type=jnp.float32)
         + b2_ref[...])                                        # (bt*n, Evp) f32

    # Per-graph mean over n vertices: pure VPU/XLU sublane reduction (no MXU,
    # no constant mean matrix). Rows are graph-major, so graph g owns rows
    # g*n .. g*n + n - 1 and the (bt, n, Evp) reshape is layout-friendly.
    evp = v.shape[-1]
    dpair = jnp.sum(v.reshape(bt, n, evp), axis=1) * inv_n     # (bt, Evp) f32

    # Final MLP, batched over the whole tile.
    h2 = jnp.maximum(
        jnp.dot(dpair.astype(cdt), w3_ref[...],
                preferred_element_type=jnp.float32)
        + b3_ref[...], 0.0)                                    # (bt, Hp)
    out = (jnp.dot(h2.astype(cdt), w4_ref[...],
                   preferred_element_type=jnp.float32)
           + b4_ref[...])                                      # (bt, Ep)

    out_ref[...] = out.astype(out_ref.dtype)


def conv_model_forward(laplacian_powers, params, *, rows_target=1024,
                       compute_dtype=jnp.float32, lane=128):
    """laplacian_powers: (B, N, D) float32; params: tuple of weights/biases.

    compute_dtype=bfloat16 doubles MXU rate on all generations (v5e/v6e/v7x);
    bias-add/ReLU/mean/accumulation stay f32.
    """
    wf, w1, b1, w2, b2, w3, b3, w4, b4 = params
    B, N, D = laplacian_powers.shape
    E = w4.shape[1]

    # --- algebraic fusion: filters@W1 == lp @ (wf @ W1) (exact, no nonlinearity)
    w01 = wf @ w1                                              # (D, H)

    # --- lane padding of feature dims to multiples of 128 (exact) -------------
    def pad_lane(x):
        pad = (-x.shape[-1]) % lane
        if pad == 0:
            return x
        return jnp.pad(x, [(0, 0)] * (x.ndim - 1) + [(0, pad)])

    def pad_rows(x, rows):
        pad = rows - x.shape[0]
        if pad == 0:
            return x
        return jnp.pad(x, [(0, pad)] + [(0, 0)] * (x.ndim - 1))

    Hp = w01.shape[1] + ((-w01.shape[1]) % lane)
    Evp = w2.shape[1] + ((-w2.shape[1]) % lane)
    Ep = E + ((-E) % lane)

    # Matmul weights cast once in the wrapper (tiny, resident in VMEM).
    w01p = pad_lane(w01).astype(compute_dtype)                 # (D,   Hp)
    b1p = pad_lane(b1)                                         # (1,   Hp)  f32
    w2p = pad_lane(pad_rows(w2, Hp)).astype(compute_dtype)     # (Hp,  Evp)
    b2p = pad_lane(b2)                                         # (1,   Evp) f32
    w3p = pad_lane(pad_rows(w3, Evp)).astype(compute_dtype)    # (Evp, Hp)
    b3p = pad_lane(b3)                                         # (1,   Hp)  f32
    w4p = pad_lane(pad_rows(w4, Hp)).astype(compute_dtype)     # (Hp,  Ep)
    b4p = pad_lane(b4)                                         # (1,   Ep)  f32

    # --- batch tiling ---------------------------------------------------------
    # Target ~rows_target (= bt*N) rows per step: fills the MXU M dimension and
    # amortizes the ~0.35us/step overhead (the grid is a serial loop on
    # single-TC v5e/v6e). When the grid does split into multiple tiles, keep bt
    # a multiple of 8 so the (bt*N, D) and (bt, Ep) blocks stay sublane aligned;
    # the batch axis stays "parallel" so v7x's two TensorCores split the tiles.
    bt = max(1, min(rows_target // max(N, 1), B))
    if bt < B:
        bt = max(8, (bt // 8) * 8)
        bt = min(bt, B)
    num_tiles = pl.cdiv(B, bt)
    B_pad = num_tiles * bt

    lp = laplacian_powers
    if B_pad != B:
        lp = jnp.pad(lp, ((0, B_pad - B), (0, 0), (0, 0)))
    # Free HBM reshape; the kernel sees a contiguous 2D row slab per tile and
    # casts it to compute_dtype on-chip (no extra HBM pass for the cast).
    lp_flat = lp.reshape(B_pad * N, D)                         # (B_pad*N, D) f32

    consts = (w01p, b1p, w2p, b2p, w3p, b3p, w4p, b4p)

    def full_spec(a):
        nd = a.ndim
        return pl.BlockSpec(a.shape, lambda t, _nd=nd: (0,) * _nd)

    kernel = functools.partial(_conv_model_kernel, bt=bt, n=N)

    flops = (2 * B_pad * N * (D * Hp + Hp * Evp)    # vertex MLP
             + B_pad * N * Evp                      # per-graph mean reduction
             + 2 * B_pad * (Evp * Hp + Hp * Ep))    # final MLP
    bytes_accessed = (int(lp_flat.size) * lp_flat.dtype.itemsize
                      + sum(int(a.size) * a.dtype.itemsize for a in consts)
                      + B_pad * Ep * 4)
    cost = pl.CostEstimate(flops=int(flops), transcendentals=0,
                           bytes_accessed=int(bytes_accessed))

    out_padded = pl.pallas_call(
        kernel,
        out_shape=jax.ShapeDtypeStruct((B_pad, Ep), jnp.float32),
        grid=(num_tiles,),
        in_specs=[pl.BlockSpec((bt * N, D), lambda t: (t, 0))]
                 + [full_spec(a) for a in consts],
        out_specs=pl.BlockSpec((bt, Ep), lambda t: (t, 0)),
        compiler_params=pltpu.CompilerParams(
            dimension_semantics=("parallel",)),
        cost_estimate=cost,
    )(lp_flat, *consts)

    return out_padded[:B, :E]


def init_params(key, filter_degree, n_filters, hidden, vertex_emb, emb):
    ks = jax.random.split(key, 9)

    def lin_w(k, fan_in, fan_out):
        return (jax.random.normal(k, (fan_in, fan_out), jnp.float32)
                / jnp.sqrt(jnp.float32(fan_in)))

    wf = (jax.random.normal(ks[0], (filter_degree, n_filters), jnp.float32)
          / jnp.sqrt(jnp.float32(filter_degree)))
    w1 = lin_w(ks[1], n_filters, hidden)
    b1 = 0.01 * jax.random.normal(ks[2], (1, hidden), jnp.float32)
    w2 = lin_w(ks[3], hidden, vertex_emb)
    b2 = 0.01 * jax.random.normal(ks[4], (1, vertex_emb), jnp.float32)
    w3 = lin_w(ks[5], vertex_emb, hidden)
    b3 = 0.01 * jax.random.normal(ks[6], (1, hidden), jnp.float32)
    w4 = lin_w(ks[7], hidden, emb)
    b4 = 0.01 * jax.random.normal(ks[8], (1, emb), jnp.float32)
    return (wf, w1, b1, w2, b2, w3, b3, w4, b4)


def reference_forward(lp, params):
    wf, w1, b1, w2, b2, w3, b3, w4, b4 = params
    filters = lp @ wf
    h1 = jnp.maximum(filters @ w1 + b1, 0.0)
    v = h1 @ w2 + b2
    d = jnp.mean(v, axis=-2)
    h2 = jnp.maximum(d @ w3 + b3[0], 0.0)
    return h2 @ w4 + b4[0]


if __name__ == "__main__":
    # Small, module-consistent shapes.
    B = 2                      # batch of graphs
    graph_size = 8             # N vertices
    filter_degree = 16         # 2 * graph_size (module default)
    n_filters = 8              # graph_size (module default)
    hidden = 32                # hidden_size (small for test)
    vertex_emb = 32            # vertex_embedding_size
    emb = 32                   # embedding_size

    key = jax.random.PRNGKey(0)
    k_lp, k_par = jax.random.split(key)

    # Synthetic precomputed laplacian_powers (as produced by prepare_data):
    # log(1 + diag powers) >= 0, so sample non-negative values.
    # TODO(synk): prepare_data (laplacian power diagonals) is data prep, kept outside the kernel.
    lp = jnp.log1p(jnp.abs(
        jax.random.normal(k_lp, (B, graph_size, filter_degree), jnp.float32)))

    params = init_params(k_par, filter_degree, n_filters, hidden, vertex_emb, emb)
    ref = reference_forward(lp, params)

    # f32 path (exact up to f32 associativity from fusion/padding/reduction order).
    out = jax.block_until_ready(conv_model_forward(lp, params))
    assert out.shape == (B, emb), out.shape
    assert jnp.allclose(out, ref, atol=1e-4, rtol=1e-4), \
        float(jnp.max(jnp.abs(out - ref)))

    # bf16 matmul-input path (full-rate MXU on v5e/v6e/v7x); looser tolerance.
    out_bf16 = jax.block_until_ready(
        conv_model_forward(lp, params, compute_dtype=jnp.bfloat16))
    assert out_bf16.shape == (B, emb), out_bf16.shape
    assert jnp.allclose(out_bf16, ref, atol=1e-1, rtol=1e-1), \
        float(jnp.max(jnp.abs(out_bf16 - ref)))

    print("KERNEL_OK")
</pallas_src>

<mosaic_0001>
module attributes {stable_mosaic.version = 11 : i64} {
  func.func @_conv_model_kernel(%arg0: i32, %arg1: memref<16x16xf32, #tpu.memory_space<vmem>>, %arg2: memref<16x128xf32, #tpu.memory_space<vmem>>, %arg3: memref<1x128xf32, #tpu.memory_space<vmem>>, %arg4: memref<128x128xf32, #tpu.memory_space<vmem>>, %arg5: memref<1x128xf32, #tpu.memory_space<vmem>>, %arg6: memref<128x128xf32, #tpu.memory_space<vmem>>, %arg7: memref<1x128xf32, #tpu.memory_space<vmem>>, %arg8: memref<128x128xf32, #tpu.memory_space<vmem>>, %arg9: memref<1x128xf32, #tpu.memory_space<vmem>>, %arg10: memref<2x128xf32, #tpu.memory_space<vmem>>) attributes {dimension_semantics = [#tpu.dimension_semantics<parallel>], iteration_bounds = array<i64: 1>, scalar_prefetch = 0 : i64, scratch_operands = 0 : i64, tpu.core_type = #tpu.core_type<tc>, window_params = [{transform_indices = @transform_0, window_bounds = array<i64: 16, 16>}, {pipeline_mode = #tpu.pipeline_mode<synchronous>, transform_indices = @transform_1, window_bounds = array<i64: 16, 128>}, {pipeline_mode = #tpu.pipeline_mode<synchronous>, transform_indices = @transform_2, window_bounds = array<i64: 1, 128>}, {pipeline_mode = #tpu.pipeline_mode<synchronous>, transform_indices = @transform_3, window_bounds = array<i64: 128, 128>}, {pipeline_mode = #tpu.pipeline_mode<synchronous>, transform_indices = @transform_4, window_bounds = array<i64: 1, 128>}, {pipeline_mode = #tpu.pipeline_mode<synchronous>, transform_indices = @transform_5, window_bounds = array<i64: 128, 128>}, {pipeline_mode = #tpu.pipeline_mode<synchronous>, transform_indices = @transform_6, window_bounds = array<i64: 1, 128>}, {pipeline_mode = #tpu.pipeline_mode<synchronous>, transform_indices = @transform_7, window_bounds = array<i64: 128, 128>}, {pipeline_mode = #tpu.pipeline_mode<synchronous>, transform_indices = @transform_8, window_bounds = array<i64: 1, 128>}, {transform_indices = @transform_9, window_bounds = array<i64: 2, 128>}]} {
    %c0 = arith.constant 0 : index
    %c0_0 = arith.constant 0 : index
    %0 = vector.load %arg1[%c0, %c0_0] : memref<16x16xf32, #tpu.memory_space<vmem>>, vector<16x16xf32>
    %c0_1 = arith.constant 0 : index
    %c0_2 = arith.constant 0 : index
    %1 = vector.load %arg2[%c0_1, %c0_2] : memref<16x128xf32, #tpu.memory_space<vmem>>, vector<16x128xf32>
    %cst = arith.constant dense<0.000000e+00> : vector<16x128xf32>
    %2 = tpu.matmul %0, %1, %cst {dimension_numbers = #tpu.dot_dimension_numbers<[1], [0], [0], [1], [0, 0, 1, 1], [], []>} : vector<16x16xf32>, vector<16x128xf32>, vector<16x128xf32> -> vector<16x128xf32>
    %c0_3 = arith.constant 0 : index
    %c0_4 = arith.constant 0 : index
    %3 = vector.load %arg3[%c0_3, %c0_4] : memref<1x128xf32, #tpu.memory_space<vmem>>, vector<1x128xf32>
    %4 = vector.broadcast %3 : vector<1x128xf32> to vector<16x128xf32>
    %5 = arith.addf %2, %4 : vector<16x128xf32>
    %cst_5 = arith.constant 0.000000e+00 : f32
    %6 = vector.broadcast %cst_5 : f32 to vector<16x128xf32>
    %7 = arith.maximumf %5, %6 : vector<16x128xf32>
    %c0_6 = arith.constant 0 : index
    %c0_7 = arith.constant 0 : index
    %8 = vector.load %arg4[%c0_6, %c0_7] : memref<128x128xf32, #tpu.memory_space<vmem>>, vector<128x128xf32>
    %cst_8 = arith.constant dense<0.000000e+00> : vector<16x128xf32>
    %9 = tpu.matmul %7, %8, %cst_8 {dimension_numbers = #tpu.dot_dimension_numbers<[1], [0], [0], [1], [0, 0, 1, 1], [], []>} : vector<16x128xf32>, vector<128x128xf32>, vector<16x128xf32> -> vector<16x128xf32>
    %c0_9 = arith.constant 0 : index
    %c0_10 = arith.constant 0 : index
    %10 = vector.load %arg5[%c0_9, %c0_10] : memref<1x128xf32, #tpu.memory_space<vmem>>, vector<1x128xf32>
    %11 = vector.broadcast %10 : vector<1x128xf32> to vector<16x128xf32>
    %12 = arith.addf %9, %11 : vector<16x128xf32>
    %13 = vector.shape_cast %12 : vector<16x128xf32> to vector<2x8x128xf32>
    %cst_11 = arith.constant dense<0.000000e+00> : vector<2x128xf32>
    %14 = vector.multi_reduction <add>, %13, %cst_11 [1] : vector<2x8x128xf32> to vector<2x128xf32>
    %cst_12 = arith.constant 1.250000e-01 : f32
    %15 = vector.broadcast %cst_12 : f32 to vector<2x128xf32>
    %16 = arith.mulf %14, %15 : vector<2x128xf32>
    %c0_13 = arith.constant 0 : index
    %c0_14 = arith.constant 0 : index
    %17 = vector.load %arg6[%c0_13, %c0_14] : memref<128x128xf32, #tpu.memory_space<vmem>>, vector<128x128xf32>
    %cst_15 = arith.constant dense<0.000000e+00> : vector<2x128xf32>
    %18 = tpu.matmul %16, %17, %cst_15 {dimension_numbers = #tpu.dot_dimension_numbers<[1], [0], [0], [1], [0, 0, 1, 1], [], []>} : vector<2x128xf32>, vector<128x128xf32>, vector<2x128xf32> -> vector<2x128xf32>
    %c0_16 = arith.constant 0 : index
    %c0_17 = arith.constant 0 : index
    %19 = vector.load %arg7[%c0_16, %c0_17] : memref<1x128xf32, #tpu.memory_space<vmem>>, vector<1x128xf32>
    %20 = vector.broadcast %19 : vector<1x128xf32> to vector<2x128xf32>
    %21 = arith.addf %18, %20 : vector<2x128xf32>
    %cst_18 = arith.constant 0.000000e+00 : f32
    %22 = vector.broadcast %cst_18 : f32 to vector<2x128xf32>
    %23 = arith.maximumf %21, %22 : vector<2x128xf32>
    %c0_19 = arith.constant 0 : index
    %c0_20 = arith.constant 0 : index
    %24 = vector.load %arg8[%c0_19, %c0_20] : memref<128x128xf32, #tpu.memory_space<vmem>>, vector<128x128xf32>
    %cst_21 = arith.constant dense<0.000000e+00> : vector<2x128xf32>
    %25 = tpu.matmul %23, %24, %cst_21 {dimension_numbers = #tpu.dot_dimension_numbers<[1], [0], [0], [1], [0, 0, 1, 1], [], []>} : vector<2x128xf32>, vector<128x128xf32>, vector<2x128xf32> -> vector<2x128xf32>
    %c0_22 = arith.constant 0 : index
    %c0_23 = arith.constant 0 : index
    %26 = vector.load %arg9[%c0_22, %c0_23] : memref<1x128xf32, #tpu.memory_space<vmem>>, vector<1x128xf32>
    %27 = vector.broadcast %26 : vector<1x128xf32> to vector<2x128xf32>
    %28 = arith.addf %25, %27 : vector<2x128xf32>
    %c0_24 = arith.constant 0 : index
    %c0_25 = arith.constant 0 : index
    %29 = vector.load %arg10[%c0_24, %c0_25] : memref<2x128xf32, #tpu.memory_space<vmem>>, vector<2x128xf32>
    tpu.vector_store %arg10[%c0_24, %c0_25], %28 {strides = array<i32>} : memref<2x128xf32, #tpu.memory_space<vmem>>, vector<2x128xf32>,
    return
  }
  func.func @transform_0(%arg0: i32) -> (i32, i32) {
    %c0_i32 = arith.constant 0 : i32
    %c0_i32_0 = arith.constant 0 : i32
    return %arg0, %c0_i32 : i32, i32
  }
  func.func @transform_1(%arg0: i32) -> (i32, i32) {
    %c0_i32 = arith.constant 0 : i32
    %c0_i32_0 = arith.constant 0 : i32
    %c0_i32_1 = arith.constant 0 : i32
    return %c0_i32, %c0_i32_0 : i32, i32
  }
  func.func @transform_2(%arg0: i32) -> (i32, i32) {
    %c0_i32 = arith.constant 0 : i32
    %c0_i32_0 = arith.constant 0 : i32
    %c0_i32_1 = arith.constant 0 : i32
    return %c0_i32, %c0_i32_0 : i32, i32
  }
  func.func @transform_3(%arg0: i32) -> (i32, i32) {
    %c0_i32 = arith.constant 0 : i32
    %c0_i32_0 = arith.constant 0 : i32
    %c0_i32_1 = arith.constant 0 : i32
    return %c0_i32, %c0_i32_0 : i32, i32
  }
  func.func @transform_4(%arg0: i32) -> (i32, i32) {
    %c0_i32 = arith.constant 0 : i32
    %c0_i32_0 = arith.constant 0 : i32
    %c0_i32_1 = arith.constant 0 : i32
    return %c0_i32, %c0_i32_0 : i32, i32
  }
  func.func @transform_5(%arg0: i32) -> (i32, i32) {
    %c0_i32 = arith.constant 0 : i32
    %c0_i32_0 = arith.constant 0 : i32
    %c0_i32_1 = arith.constant 0 : i32
    return %c0_i32, %c0_i32_0 : i32, i32
  }
  func.func @transform_6(%arg0: i32) -> (i32, i32) {
    %c0_i32 = arith.constant 0 : i32
    %c0_i32_0 = arith.constant 0 : i32
    %c0_i32_1 = arith.constant 0 : i32
    return %c0_i32, %c0_i32_0 : i32, i32
  }
  func.func @transform_7(%arg0: i32) -> (i32, i32) {
    %c0_i32 = arith.constant 0 : i32
    %c0_i32_0 = arith.constant 0 : i32
    %c0_i32_1 = arith.constant 0 : i32
    return %c0_i32, %c0_i32_0 : i32, i32
  }
  func.func @transform_8(%arg0: i32) -> (i32, i32) {
    %c0_i32 = arith.constant 0 : i32
    %c0_i32_0 = arith.constant 0 : i32
    %c0_i32_1 = arith.constant 0 : i32
    return %c0_i32, %c0_i32_0 : i32, i32
  }
  func.func @transform_9(%arg0: i32) -> (i32, i32) {
    %c0_i32 = arith.constant 0 : i32
    %c0_i32_0 = arith.constant 0 : i32
    return %arg0, %c0_i32 : i32, i32
  }
}

</mosaic_0001>

<llo_original>
// kernel: tpu_custom_call.1
$region0: #{tpu_custom_call.1}
  #allocation0 [shape = 'u32[]', space=smem, size = 0x4, offset = 0x4, fixed_abs, tag = 'smem constant byte address 0x4 - core index']
  #allocation1 [shape = 'u32[72,128]{1,0:T(1,128)}', space=vmem, size = 0x9000, scoped, tag = 'internal scratch']
  %s0 = inlined_call_operand.hbm [shape: f32[16,16], index: 0, kind: input, shape index: {}]
  %s1 = inlined_call_operand.hbm [shape: f32[16,128], index: 1, kind: input, shape index: {}]
  %s2 = inlined_call_operand.vmem [shape: f32[1,128], index: 2, kind: input, shape index: {}]
  %s3 = inlined_call_operand.hbm [shape: f32[128,128], index: 3, kind: input, shape index: {}]
  %s4 = inlined_call_operand.vmem [shape: f32[1,128], index: 4, kind: input, shape index: {}]
  %s5 = inlined_call_operand.hbm [shape: f32[128,128], index: 5, kind: input, shape index: {}]
  %s6 = inlined_call_operand.vmem [shape: f32[1,128], index: 6, kind: input, shape index: {}]
  %s7 = inlined_call_operand.hbm [shape: f32[128,128], index: 7, kind: input, shape index: {}]
  %s8 = inlined_call_operand.vmem [shape: f32[1,128], index: 8, kind: input, shape index: {}]
  %s9 = inlined_call_operand.hbm [shape: f32[2,128], index: 9, kind: output, shape index: {}]
  %s10 = sld [smem:[#allocation0]]
  $region66: #{tpu_custom_call.1} parent=0
    _
  %s12 = ssub.s32 1, %s10
  %s13 = scalar_select 0, %s12, %s10
  $region1: #{tpu_custom_call.1} parent=0
    #allocation2 [shape = 'u8[8192]{0}', space=vmem, size = 0x2000, scoped, tag = 'input window, operand 0, single buffered']
    #allocation3 [shape = 's32[1]{0}', space=sflag, size = 0x4, scoped, tag = 'scoped memory for tpu_custom_call.1']
    #allocation4 [shape = 's32[1]{0}', space=sflag, size = 0x4, scoped, tag = 'scoped memory for tpu_custom_call.1']
    #allocation5 [shape = 'u8[8192]{0}', space=vmem, size = 0x2000, scoped, tag = 'input window, operand 1, single buffered']
    #allocation6 [shape = 's32[1]{0}', space=sflag, size = 0x4, scoped, tag = 'scoped memory for tpu_custom_call.1']
    #allocation7 [shape = 'u8[65536]{0}', space=vmem, size = 0x10000, scoped, tag = 'input window, operand 3, single buffered']
    #allocation8 [shape = 'u8[65536]{0}', space=vmem, size = 0x10000, scoped, tag = 'input window, operand 5, single buffered']
    #allocation9 [shape = 's32[1]{0}', space=sflag, size = 0x4, scoped, tag = 'scoped memory for tpu_custom_call.1']
    #allocation10 [shape = 'u8[65536]{0}', space=vmem, size = 0x10000, scoped, tag = 'input window, operand 7, single buffered']
    #allocation11 [shape = 'u8[1024]{0}', space=vmem, size = 0x400, scoped, tag = 'output window, operand 0, single buffered']
    %14 = vsyncpa [#allocation3], 0
    %15 = vsyncpa [#allocation6], 0
    %16 = vsyncpa [#allocation9], 0
    %17 = vsyncpa [#allocation4], 0
    // Predicated region
    $region2: #{tpu_custom_call.1} parent=1 // pred_check
      _
    $region3: #{tpu_custom_call.1} parent=1 // pred_check_branch
      %19 = sbr.rel (0) target = $region5
    $region4: #{tpu_custom_call.1} parent=1 // pred_region
      %21 = vsyncadd [#allocation3], 0
      %s22 = sshll.u32 %s0, 4
      %s23 = int_to_ptr.hbm [resolvable:$true] %s22
      %s24 = sshll.u32 [#allocation2], 4
      %s25 = int_to_ptr.vmem [resolvable:$true] %s24
      %30 = dma.hbm_to_vmem [thread:$0]  %s23, 256, %s25, [#allocation3], 128, 128, 8
    $region5: #{tpu_custom_call.1} parent=1 // pred_fallthru
      _
    // Predicated region
    $region6: #{tpu_custom_call.1} parent=1 // pred_check
      _
    $region7: #{tpu_custom_call.1} parent=1 // pred_check_branch
      %32 = sbr.rel (0) target = $region9
    $region8: #{tpu_custom_call.1} parent=1 // pred_region
      %34 = vsyncadd [#allocation6], 0
      %s35 = sshll.u32 %s1, 4
      %s36 = int_to_ptr.hbm [resolvable:$true] %s35
      %s37 = sshll.u32 [#allocation5], 4
      %s38 = int_to_ptr.vmem [resolvable:$true] %s37
      %43 = dma.hbm_to_vmem [thread:$0]  %s36, 256, %s38, [#allocation6], 128, 128, 8
    $region9: #{tpu_custom_call.1} parent=1 // pred_fallthru
      _
    // Predicated region
    $region10: #{tpu_custom_call.1} parent=1 // pred_check
      _
    $region11: #{tpu_custom_call.1} parent=1 // pred_check_branch
      %45 = sbr.rel (0) target = $region13
    $region12: #{tpu_custom_call.1} parent=1 // pred_region
      _
    $region13: #{tpu_custom_call.1} parent=1 // pred_fallthru
      _
    // Predicated region
    $region14: #{tpu_custom_call.1} parent=1 // pred_check
      _
    $region15: #{tpu_custom_call.1} parent=1 // pred_check_branch
      %47 = sbr.rel (0) target = $region17
    $region16: #{tpu_custom_call.1} parent=1 // pred_region
      %49 = vsyncadd [#allocation6], 0
      %s50 = sshll.u32 %s3, 4
      %s51 = int_to_ptr.hbm [resolvable:$true] %s50
      %s52 = sshll.u32 [#allocation7], 4
      %s53 = int_to_ptr.vmem [resolvable:$true] %s52
      %58 = dma.hbm_to_vmem [thread:$0]  %s51, 2048, %s53, [#allocation6], 128, 128, 8
    $region17: #{tpu_custom_call.1} parent=1 // pred_fallthru
      _
    // Predicated region
    $region18: #{tpu_custom_call.1} parent=1 // pred_check
      _
    $region19: #{tpu_custom_call.1} parent=1 // pred_check_branch
      %60 = sbr.rel (0) target = $region21
    $region20: #{tpu_custom_call.1} parent=1 // pred_region
      _
    $region21: #{tpu_custom_call.1} parent=1 // pred_fallthru
      _
    // Predicated region
    $region22: #{tpu_custom_call.1} parent=1 // pred_check
      _
    $region23: #{tpu_custom_call.1} parent=1 // pred_check_branch
      %62 = sbr.rel (0) target = $region25
    $region24: #{tpu_custom_call.1} parent=1 // pred_region
      %64 = vsyncadd [#allocation9], 0
      %s65 = sshll.u32 %s5, 4
      %s66 = int_to_ptr.hbm [resolvable:$true] %s65
      %s67 = sshll.u32 [#allocation8], 4
      %s68 = int_to_ptr.vmem [resolvable:$true] %s67
      %73 = dma.hbm_to_vmem [thread:$0]  %s66, 2048, %s68, [#allocation9], 128, 128, 8
    $region25: #{tpu_custom_call.1} parent=1 // pred_fallthru
      _
    // Predicated region
    $region26: #{tpu_custom_call.1} parent=1 // pred_check
      _
    $region27: #{tpu_custom_call.1} parent=1 // pred_check_branch
      %75 = sbr.rel (0) target = $region29
    $region28: #{tpu_custom_call.1} parent=1 // pred_region
      _
    $region29: #{tpu_custom_call.1} parent=1 // pred_fallthru
      _
    // Predicated region
    $region30: #{tpu_custom_call.1} parent=1 // pred_check
      _
    $region31: #{tpu_custom_call.1} parent=1 // pred_check_branch
      %77 = sbr.rel (0) target = $region33
    $region32: #{tpu_custom_call.1} parent=1 // pred_region
      %79 = vsyncadd [#allocation9], 0
      %s80 = sshll.u32 %s7, 4
      %s81 = int_to_ptr.hbm [resolvable:$true] %s80
      %s82 = sshll.u32 [#allocation10], 4
      %s83 = int_to_ptr.vmem [resolvable:$true] %s82
      %88 = dma.hbm_to_vmem [thread:$0]  %s81, 2048, %s83, [#allocation9], 128, 128, 8
    $region33: #{tpu_custom_call.1} parent=1 // pred_fallthru
      _
    // Predicated region
    $region34: #{tpu_custom_call.1} parent=1 // pred_check
      _
    $region35: #{tpu_custom_call.1} parent=1 // pred_check_branch
      %90 = sbr.rel (0) target = $region37
    $region36: #{tpu_custom_call.1} parent=1 // pred_region
      _
    $region37: #{tpu_custom_call.1} parent=1 // pred_fallthru
      _
    // Predicated region
    $region38: #{tpu_custom_call.1} parent=1 // pred_check
      _
    $region39: #{tpu_custom_call.1} parent=1 // pred_check_branch
      %92 = sbr.rel (0) target = $region41
    $region40: #{tpu_custom_call.1} parent=1 // pred_region
      %94 = dma.done [#allocation3], 256
    $region41: #{tpu_custom_call.1} parent=1 // pred_fallthru
      _
    // Predicated region
    $region42: #{tpu_custom_call.1} parent=1 // pred_check
      _
    $region43: #{tpu_custom_call.1} parent=1 // pred_check_branch
      %96 = sbr.rel (0) target = $region45
    $region44: #{tpu_custom_call.1} parent=1 // pred_region
      %98 = dma.done [#allocation6], 256
    $region45: #{tpu_custom_call.1} parent=1 // pred_fallthru
      _
    // Predicated region
    $region46: #{tpu_custom_call.1} parent=1 // pred_check
      _
    $region47: #{tpu_custom_call.1} parent=1 // pred_check_branch
      %100 = sbr.rel (0) target = $region49
    $region48: #{tpu_custom_call.1} parent=1 // pred_region
      %102 = dma.done [#allocation6], 2048
    $region49: #{tpu_custom_call.1} parent=1 // pred_fallthru
      _
    // Predicated region
    $region50: #{tpu_custom_call.1} parent=1 // pred_check
      _
    $region51: #{tpu_custom_call.1} parent=1 // pred_check_branch
      %104 = sbr.rel (0) target = $region53
    $region52: #{tpu_custom_call.1} parent=1 // pred_region
      %106 = dma.done [#allocation9], 2048
    $region53: #{tpu_custom_call.1} parent=1 // pred_fallthru
      _
    // Predicated region
    $region54: #{tpu_custom_call.1} parent=1 // pred_check
      _
    $region55: #{tpu_custom_call.1} parent=1 // pred_check_branch
      %108 = sbr.rel (0) target = $region57
    $region56: #{tpu_custom_call.1} parent=1 // pred_region
      %110 = dma.done [#allocation9], 2048
    $region57: #{tpu_custom_call.1} parent=1 // pred_fallthru
      _
    %v111 = vld [vmem:[#allocation2] sm:$0xff]
    %v112 = vld [vmem:[#allocation2 + $0x8] sm:$0xff]
    %v113 = vld [vmem:[#allocation5] sm:$0xff]
    %v114 = vld [vmem:[#allocation5 + $0x8] sm:$0xff]
    %v115 = vld [vmem:[%s2] sm:$0x1]
    %v117 = vperm.slane %v115, 0
    %vm119 = vcmask 130048
    %v121 = vsel %vm119, %v111, 0
    %v124 = vsel %vm119, %v112, 0
    %126 = vmatpush.msra.mxu0 0.0
    %127 = vmatpush.msra.mxu0 0.0
    %128 = vmatpush.msra.mxu0 0.0
    %129 = vmatpush.msra.mxu0 0.0
    %130 = vmatpush.msra.mxu0 0.0
    %131 = vmatpush.msra.mxu0 0.0
    %132 = vmatpush.msra.mxu0 0.0
    %133 = vmatpush.msra.mxu0 0.0
    %134 = vmatpush.msra.mxu0 0.0
    %135 = vmatpush.msra.mxu0 0.0
    %136 = vmatpush.msra.mxu0 0.0
    %137 = vmatpush.msra.mxu0 0.0
    %138 = vmatpush.msra.mxu0 0.0
    %139 = vmatpush.msra.mxu0 0.0
    %140 = vmatpush.msra.mxu0 %v114
    %141 = vmatpush.msra.mxu0 %v113
    %142 = vmatmul.f32.gmra.mxu0 %v121
    %v143 = vpop.f32.mrf.mxu0
    %v144 = vadd.f32 %v117, %v143
    %145 = vmatmul.f32.gmra.mxu0 %v124
    %v146 = vpop.f32.mrf.mxu0
    %v147 = vadd.f32 %v117, %v146
    %148 = vdwg.mxu0
    %v149 = vmax.f32 %v144, 0.0
    %v150 = vmax.f32 %v147, 0.0
    %v151 = vld [vmem:[#allocation7] sm:$0xff]
    %v152 = vld [vmem:[#allocation7 + $0x8] sm:$0xff]
    %v153 = vld [vmem:[#allocation7 + $0x10] sm:$0xff]
    %v154 = vld [vmem:[#allocation7 + $0x18] sm:$0xff]
    %v155 = vld [vmem:[#allocation7 + $0x20] sm:$0xff]
    %v156 = vld [vmem:[#allocation7 + $0x28] sm:$0xff]
    %v157 = vld [vmem:[#allocation7 + $0x30] sm:$0xff]
    %v158 = vld [vmem:[#allocation7 + $0x38] sm:$0xff]
    %v159 = vld [vmem:[#allocation7 + $0x40] sm:$0xff]
    %v160 = vld [vmem:[#allocation7 + $0x48] sm:$0xff]
    %v161 = vld [vmem:[#allocation7 + $0x50] sm:$0xff]
    %v162 = vld [vmem:[#allocation7 + $0x58] sm:$0xff]
    %v163 = vld [vmem:[#allocation7 + $0x60] sm:$0xff]
    %v164 = vld [vmem:[#allocation7 + $0x68] sm:$0xff]
    %v165 = vld [vmem:[#allocation7 + $0x70] sm:$0xff]
    %v166 = vld [vmem:[#allocation7 + $0x78] sm:$0xff]
    %v167 = vld [vmem:[%s4] sm:$0x1]
    %v169 = vperm.slane %v167, 0
    %171 = vmatpush.msra.mxu0 %v166
    %172 = vmatpush.msra.mxu0 %v165
    %173 = vmatpush.msra.mxu0 %v164
    %174 = vmatpush.msra.mxu0 %v163
    %175 = vmatpush.msra.mxu0 %v162
    %176 = vmatpush.msra.mxu0 %v161
    %177 = vmatpush.msra.mxu0 %v160
    %178 = vmatpush.msra.mxu0 %v159
    %179 = vmatpush.msra.mxu0 %v158
    %180 = vmatpush.msra.mxu0 %v157
    %181 = vmatpush.msra.mxu0 %v156
    %182 = vmatpush.msra.mxu0 %v155
    %183 = vmatpush.msra.mxu0 %v154
    %184 = vmatpush.msra.mxu0 %v153
    %185 = vmatpush.msra.mxu0 %v152
    %186 = vmatpush.msra.mxu0 %v151
    %187 = vmatmul.f32.gmra.mxu0 %v149
    %v188 = vpop.f32.mrf.mxu0
    %v189 = vadd.f32 %v169, %v188
    %190 = vmatmul.f32.gmra.mxu0 %v150
    %v191 = vpop.f32.mrf.mxu0
    %v192 = vadd.f32 %v169, %v191
    %193 = vdwg.mxu0
    %v194 = vrot.slane %v189, 4
    %v195 = vadd.f32 %v189, %v194
    %v196 = vrot.slane %v195, 2
    %v197 = vadd.f32 %v195, %v196
    %v198 = vrot.slane %v197, 1
    %v199 = vadd.f32 %v197, %v198
    %v200 = vrot.slane %v192, 4
    %v201 = vadd.f32 %v192, %v200
    %v202 = vrot.slane %v201, 2
    %v203 = vadd.f32 %v201, %v202
    %v204 = vrot.slane %v203, 1
    %v205 = vadd.f32 %v203, %v204
    %v206 = vmul.f32 %v199, 0.125
    %v207 = vmul.f32 %v205, 0.125
    %v208 = vld [vmem:[#allocation8] sm:$0xff]
    %v209 = vld [vmem:[#allocation8 + $0x8] sm:$0xff]
    %v210 = vld [vmem:[#allocation8 + $0x10] sm:$0xff]
    %v211 = vld [vmem:[#allocation8 + $0x18] sm:$0xff]
    %v212 = vld [vmem:[#allocation8 + $0x20] sm:$0xff]
    %v213 = vld [vmem:[#allocation8 + $0x28] sm:$0xff]
    %v214 = vld [vmem:[#allocation8 + $0x30] sm:$0xff]
    %v215 = vld [vmem:[#allocation8 + $0x38] sm:$0xff]
    %v216 = vld [vmem:[#allocation8 + $0x40] sm:$0xff]
    %v217 = vld [vmem:[#allocation8 + $0x48] sm:$0xff]
    %v218 = vld [vmem:[#allocation8 + $0x50] sm:$0xff]
    %v219 = vld [vmem:[#allocation8 + $0x58] sm:$0xff]
    %v220 = vld [vmem:[#allocation8 + $0x60] sm:$0xff]
    %v221 = vld [vmem:[#allocation8 + $0x68] sm:$0xff]
    %v222 = vld [vmem:[#allocation8 + $0x70] sm:$0xff]
    %v223 = vld [vmem:[#allocation8 + $0x78] sm:$0xff]
    %v224 = vld [vmem:[%s6] sm:$0x1]
    %v226 = vperm.slane %v224, 0
    %vm230 = vcmask 1041409
    %v231 = vsel %vm230, %v207, %v206
    %233 = vmatpush.msra.mxu0 %v223
    %234 = vmatpush.msra.mxu0 %v222
    %235 = vmatpush.msra.mxu0 %v221
    %236 = vmatpush.msra.mxu0 %v220
    %237 = vmatpush.msra.mxu0 %v219
    %238 = vmatpush.msra.mxu0 %v218
    %239 = vmatpush.msra.mxu0 %v217
    %240 = vmatpush.msra.mxu0 %v216
    %241 = vmatpush.msra.mxu0 %v215
    %242 = vmatpush.msra.mxu0 %v214
    %243 = vmatpush.msra.mxu0 %v213
    %244 = vmatpush.msra.mxu0 %v212
    %245 = vmatpush.msra.mxu0 %v211
    %246 = vmatpush.msra.mxu0 %v210
    %247 = vmatpush.msra.mxu0 %v209
    %248 = vmatpush.msra.mxu0 %v208
    %249 = vmatmul.f32.gmra.mxu0 %v231
    %v250 = vpop.f32.mrf.mxu0
    %v251 = vadd.f32 %v226, %v250
    %252 = vdwg.mxu0
    %v253 = vmax.f32 %v251, 0.0
    %v254 = vld [vmem:[#allocation10] sm:$0xff]
    %v255 = vld [vmem:[#allocation10 + $0x8] sm:$0xff]
    %v256 = vld [vmem:[#allocation10 + $0x10] sm:$0xff]
    %v257 = vld [vmem:[#allocation10 + $0x18] sm:$0xff]
    %v258 = vld [vmem:[#allocation10 + $0x20] sm:$0xff]
    %v259 = vld [vmem:[#allocation10 + $0x28] sm:$0xff]
    %v260 = vld [vmem:[#allocation10 + $0x30] sm:$0xff]
    %v261 = vld [vmem:[#allocation10 + $0x38] sm:$0xff]
    %v262 = vld [vmem:[#allocation10 + $0x40] sm:$0xff]
    %v263 = vld [vmem:[#allocation10 + $0x48] sm:$0xff]
    %v264 = vld [vmem:[#allocation10 + $0x50] sm:$0xff]
    %v265 = vld [vmem:[#allocation10 + $0x58] sm:$0xff]
    %v266 = vld [vmem:[#allocation10 + $0x60] sm:$0xff]
    %v267 = vld [vmem:[#allocation10 + $0x68] sm:$0xff]
    %v268 = vld [vmem:[#allocation10 + $0x70] sm:$0xff]
    %v269 = vld [vmem:[#allocation10 + $0x78] sm:$0xff]
    %v270 = vld [vmem:[%s8] sm:$0x1]
    %v272 = vperm.slane %v270, 0
    %274 = vmatpush.msra.mxu0 %v269
    %275 = vmatpush.msra.mxu0 %v268
    %276 = vmatpush.msra.mxu0 %v267
    %277 = vmatpush.msra.mxu0 %v266
    %278 = vmatpush.msra.mxu0 %v265
    %279 = vmatpush.msra.mxu0 %v264
    %280 = vmatpush.msra.mxu0 %v263
    %281 = vmatpush.msra.mxu0 %v262
    %282 = vmatpush.msra.mxu0 %v261
    %283 = vmatpush.msra.mxu0 %v260
    %284 = vmatpush.msra.mxu0 %v259
    %285 = vmatpush.msra.mxu0 %v258
    %286 = vmatpush.msra.mxu0 %v257
    %287 = vmatpush.msra.mxu0 %v256
    %288 = vmatpush.msra.mxu0 %v255
    %289 = vmatpush.msra.mxu0 %v254
    %290 = vmatmul.f32.gmra.mxu0 %v253
    %v291 = vpop.f32.mrf.mxu0
    %v292 = vadd.f32 %v272, %v291
    %293 = vdwg.mxu0
    %294 = vst [vmem:[#allocation11] sm:$0x3] %v292
    // Predicated region
    $region58: #{tpu_custom_call.1} parent=1 // pred_check
      _
    $region59: #{tpu_custom_call.1} parent=1 // pred_check_branch
      %296 = sbr.rel (0) target = $region61
    $region60: #{tpu_custom_call.1} parent=1 // pred_region
      %298 = vsyncadd [#allocation4], 0
      %s300 = sshll.u32 [#allocation11], 4
      %s301 = int_to_ptr.vmem [resolvable:$true] %s300
      %s302 = sshll.u32 %s9, 4
      %s303 = int_to_ptr.hbm [resolvable:$true] %s302
      %305 = dma.vmem_to_hbm [thread:$0]  %s301, 32, %s303, [#allocation4]
    $region61: #{tpu_custom_call.1} parent=1 // pred_fallthru
      _
    // Predicated region
    $region62: #{tpu_custom_call.1} parent=1 // pred_check
      _
    $region63: #{tpu_custom_call.1} parent=1 // pred_check_branch
      %307 = sbr.rel (0) target = $region65
    $region64: #{tpu_custom_call.1} parent=1 // pred_region
      %309 = dma.done [#allocation4], 32
    $region65: #{tpu_custom_call.1} parent=1 // pred_fallthru
      _
    %310 = vsyncpa [#allocation3], 1
    %311 = vsyncpa [#allocation6], 1
    %312 = vsyncpa [#allocation9], 1
    %313 = vsyncpa [#allocation4], 1

</llo_original>
